<compile_context>
chip_gen: v5e
topology: v5e:2x2
jax: 0.10.0
libtpu: 0.0.40
codegen_flags: <defaults>
</compile_context>

<pallas_src>
import numpy as np
import jax
import jax.numpy as jnp
from jax import lax
from jax.experimental import pallas as pl
from jax.experimental.pallas import tpu as pltpu

N_NODE = 16
EMBED_DIM = 32
HEADS = 8
CONV_DIM = 8                  # GAT out channels per head
HC = HEADS * CONV_DIM         # 64 = concat'd GAT output width
LANES = HEADS * N_NODE        # 128 = lane-packed (head, src) axis
HIDDEN = (64, 32, 16)
OUT_DIM = 1                   # n_class == 2 -> single logit
BATCH = 8
NEG_SLOPE = 0.2               # PyG GATConv leaky-relu slope
_LOG2_N = 4                   # log2(N_NODE)
_LOG2_C = 3                   # log2(CONV_DIM)


# ---------------------------------------------------------------------------
# Fused Pallas kernel: embedding -> GAT -> ReLU -> gather -> MLP
# ---------------------------------------------------------------------------
def _gcn_kernel(nid_ref, ui_ref, emb_ref, adj_ref, w_ref,
                adst_proj_ref, asrc_proj_ref, bgat_ref,
                w1a_ref, w1b_ref, b1_ref, w2_ref, b2_ref, w3_ref, b3_ref,
                w4_ref, b4_ref, out_ref):
    f32 = jnp.float32

    # ---- static routing masks, built in-kernel (no HBM traffic) -----------
    # column k of the 128-wide lane axis encodes (head h = k>>4, src j = k&15)
    lane_d = lax.broadcasted_iota(jnp.int32, (N_NODE, LANES), 1)
    sub_d = lax.broadcasted_iota(jnp.int32, (N_NODE, LANES), 0)
    dmask = ((lane_d & (N_NODE - 1)) == sub_d).astype(f32)             # (16,128)

    lane_e = lax.broadcasted_iota(jnp.int32, (HEADS, LANES), 1)
    sub_e = lax.broadcasted_iota(jnp.int32, (HEADS, LANES), 0)
    edst = (lax.shift_right_logical(lane_e, _LOG2_N) == sub_e).astype(f32)  # (8,128)

    row_r = lax.broadcasted_iota(jnp.int32, (LANES, N_NODE), 0)
    col_r = lax.broadcasted_iota(jnp.int32, (LANES, N_NODE), 1)
    rrep = ((row_r & (N_NODE - 1)) == col_r).astype(f32)               # (128,16)

    row_b = lax.broadcasted_iota(jnp.int32, (LANES, HC), 0)
    col_b = lax.broadcasted_iota(jnp.int32, (LANES, HC), 1)
    blk = (lax.shift_right_logical(row_b, _LOG2_N)
           == lax.shift_right_logical(col_b, _LOG2_C)).astype(f32)     # (128,64)

    # ---- embedding lookup: one-hot(node_ids) @ emb (MXU row routing) ------
    node_iota = lax.broadcasted_iota(jnp.int32, (N_NODE, N_NODE), 1)
    onehot_n = (nid_ref[...] == node_iota).astype(f32)                 # (16,16)
    x = jnp.dot(onehot_n, emb_ref[...], preferred_element_type=f32)    # (16,32)

    # ---- GAT projections (att vectors pre-folded into W on the host) ------
    xw = jnp.dot(x, w_ref[...], preferred_element_type=f32)            # (16,64)
    adst = jnp.dot(x, adst_proj_ref[...], preferred_element_type=f32)  # (16, 8)
    asrc = jnp.dot(x, asrc_proj_ref[...], preferred_element_type=f32)  # (16, 8)

    # ---- lane-dense attention logits for all heads: column k = h*16 + j ---
    adst_p = jnp.dot(adst, edst, preferred_element_type=f32)           # adst[i,h] @ col h*16+j
    asrc_full = jnp.dot(asrc, edst, preferred_element_type=f32)        # asrc[j',h] @ col h*16+j
    src_row = jnp.sum(asrc_full * dmask, axis=0, keepdims=True)        # (1,128): asrc[j,h]
    e = adst_p + src_row                                               # (16,128)
    e = jnp.where(e >= 0.0, e, NEG_SLOPE * e)                          # LeakyReLU
    adj_p = jnp.dot(adj_ref[...], dmask, preferred_element_type=f32)   # adj tiled per head
    e = jnp.where(adj_p > 0.0, e, -1e30)                               # single mask; exp -> 0

    # Row-wise max over all 128 lanes is a constant shift within every (i, h)
    # softmax group -> mathematically identical, numerically safe at this
    # logit scale (self loops guarantee every group is non-empty).
    m = jnp.max(e, axis=-1, keepdims=True)                             # (16, 1)
    p = jnp.exp(e - m)                                                 # (16,128); masked lanes = 0

    # ---- fused softmax-normalised aggregation: two K=128 matmuls ----------
    xw_bd = jnp.dot(rrep, xw, preferred_element_type=f32) * blk        # block-diag x@W
    num = jnp.dot(p, xw_bd, preferred_element_type=f32)                # (16,64) unnormalised
    den = jnp.dot(p, blk, preferred_element_type=f32)                  # (16,64) per-(i,h) sums
    h = num * pl.reciprocal(den, approx=False) + bgat_ref[...]
    h = jnp.maximum(h, 0.0)                                            # ReLU; dropout = identity

    # ---- index_select(h, [users; items]) as ONE one-hot matmul ------------
    gather_iota = lax.broadcasted_iota(jnp.int32, (2 * BATCH, N_NODE), 1)
    onehot_ui = (ui_ref[...] == gather_iota).astype(f32)               # (16,16)
    h_ui = jnp.dot(onehot_ui, h, preferred_element_type=f32)           # (16,64)
    h_u = h_ui[:BATCH]                                                 # (8,64) sublane-aligned
    h_i = h_ui[BATCH:]                                                 # (8,64)

    # ---- MLP: cat([h_u, h_i]) @ W1 == h_u @ W1a + h_i @ W1b ---------------
    z = jnp.dot(h_u, w1a_ref[...], preferred_element_type=f32)
    z = z + jnp.dot(h_i, w1b_ref[...], preferred_element_type=f32)
    z = jnp.maximum(z + b1_ref[...], 0.0)
    z = jnp.maximum(jnp.dot(z, w2_ref[...], preferred_element_type=f32)
                    + b2_ref[...], 0.0)
    z = jnp.maximum(jnp.dot(z, w3_ref[...], preferred_element_type=f32)
                    + b3_ref[...], 0.0)
    out_ref[...] = (jnp.dot(z, w4_ref[...], preferred_element_type=f32)
                    + b4_ref[...])


def _vmem_specs(n):
    return [pl.BlockSpec(memory_space=pltpu.MemorySpace.VMEM) for _ in range(n)]


# ---------------------------------------------------------------------------
# Python wrapper (parameter-only preprocessing + single pallas_call)
# ---------------------------------------------------------------------------
def gcn_forward(params, adj, node_ids, users, items):
    f32 = jnp.float32
    # Fold the per-head attention vectors into the GAT weight (params only).
    w3 = params["w_gat"].reshape(EMBED_DIM, HEADS, CONV_DIM)
    adst_proj = jnp.einsum("dhc,hc->dh", w3, params["att_dst"])        # (D, H)
    asrc_proj = jnp.einsum("dhc,hc->dh", w3, params["att_src"])        # (D, H)

    batch = users.shape[0]
    ui = jnp.concatenate([users.reshape(-1), items.reshape(-1)]).astype(jnp.int32)

    call = pl.pallas_call(
        _gcn_kernel,
        out_shape=jax.ShapeDtypeStruct((batch, OUT_DIM), f32),
        in_specs=_vmem_specs(17),
        out_specs=pl.BlockSpec(memory_space=pltpu.MemorySpace.VMEM),
    )
    return call(
        node_ids.reshape(N_NODE, 1).astype(jnp.int32),
        ui.reshape(2 * batch, 1),
        params["emb"], adj, params["w_gat"], adst_proj, asrc_proj,
        params["b_gat"].reshape(1, HC),
        params["w1"][:HC], params["w1"][HC:], params["b1"].reshape(1, -1),
        params["w2"], params["b2"].reshape(1, -1),
        params["w3"], params["b3"].reshape(1, -1),
        params["w4"], params["b4"].reshape(1, -1))


# ---------------------------------------------------------------------------
# Pure-JAX reference (same math) for correctness checking
# ---------------------------------------------------------------------------
def reference_forward(params, adj, node_ids, users, items):
    x = jnp.take(params["emb"], node_ids, axis=0)
    xw = x @ params["w_gat"]
    xw3 = xw.reshape(N_NODE, HEADS, CONV_DIM)
    asrc = jnp.sum(xw3 * params["att_src"][None], axis=-1)             # (N, H)
    adst = jnp.sum(xw3 * params["att_dst"][None], axis=-1)             # (N, H)
    e = adst[:, None, :] + asrc[None, :, :]                            # (i, j, h)
    e = jnp.where(e >= 0.0, e, NEG_SLOPE * e)
    e = jnp.where(adj[:, :, None] > 0.0, e, -jnp.inf)
    alpha = jax.nn.softmax(e, axis=1)
    alpha = jnp.where(adj[:, :, None] > 0.0, alpha, 0.0)
    h = jnp.einsum("ijh,jhc->ihc", alpha, xw3).reshape(N_NODE, HC)
    h = jax.nn.relu(h + params["b_gat"].reshape(1, HC))
    h_u, h_i = jnp.take(h, users, axis=0), jnp.take(h, items, axis=0)
    z = jnp.concatenate([h_u, h_i], axis=1)
    z = jax.nn.relu(z @ params["w1"] + params["b1"])
    z = jax.nn.relu(z @ params["w2"] + params["b2"])
    z = jax.nn.relu(z @ params["w3"] + params["b3"])
    return z @ params["w4"] + params["b4"]


# ---------------------------------------------------------------------------
if __name__ == "__main__":
    key = jax.random.PRNGKey(0)
    ks = jax.random.split(key, 16)

    # Deterministic synthetic parameters (shapes from the module's __init__).
    lim = float(np.sqrt(6.0 / (N_NODE + EMBED_DIM)))                   # xavier
    params = {
        "emb": jax.random.uniform(ks[0], (N_NODE, EMBED_DIM),
                                  minval=-lim, maxval=lim, dtype=jnp.float32),
        "w_gat": jax.random.normal(ks[1], (EMBED_DIM, HC), jnp.float32)
                 / np.sqrt(EMBED_DIM),
        "att_src": jax.random.normal(ks[2], (HEADS, CONV_DIM), jnp.float32) * 0.2,
        "att_dst": jax.random.normal(ks[3], (HEADS, CONV_DIM), jnp.float32) * 0.2,
        "b_gat": jax.random.normal(ks[4], (HC,), jnp.float32) * 0.05,
        "w1": jax.random.normal(ks[5], (2 * HC, HIDDEN[0]), jnp.float32) * 0.1,
        "b1": jax.random.normal(ks[6], (HIDDEN[0],), jnp.float32) * 0.01,
        "w2": jax.random.normal(ks[7], (HIDDEN[0], HIDDEN[1]), jnp.float32) * 0.1,
        "b2": jax.random.normal(ks[8], (HIDDEN[1],), jnp.float32) * 0.01,
        "w3": jax.random.normal(ks[9], (HIDDEN[1], HIDDEN[2]), jnp.float32) * 0.1,
        "b3": jax.random.normal(ks[10], (HIDDEN[2],), jnp.float32) * 0.01,
        "w4": jax.random.normal(ks[11], (HIDDEN[2], OUT_DIM), jnp.float32) * 0.1,
        "b4": jax.random.normal(ks[12], (OUT_DIM,), jnp.float32) * 0.01,
    }

    # Deterministic graph: bidirectional ring + self loops (adj[dst, src]).
    ar = jnp.arange(N_NODE)
    src = jnp.concatenate([ar, (ar + 1) % N_NODE])
    dst = jnp.concatenate([(ar + 1) % N_NODE, ar])
    adj = jnp.zeros((N_NODE, N_NODE), jnp.float32).at[dst, src].set(1.0)
    adj = adj.at[ar, ar].set(1.0)                                      # self loops

    node_ids = jnp.arange(N_NODE, dtype=jnp.int32)                     # data.x
    users = jax.random.randint(ks[13], (BATCH,), 0, N_NODE, jnp.int32)
    items = jax.random.randint(ks[14], (BATCH,), 0, N_NODE, jnp.int32)

    logits = gcn_forward(params, adj, node_ids, users, items)
    logits = jax.block_until_ready(logits)

    ref = jax.block_until_ready(
        reference_forward(params, adj, node_ids, users, items))

    assert logits.shape == (BATCH, OUT_DIM)
    np.testing.assert_allclose(np.asarray(logits), np.asarray(ref),
                               rtol=1e-4, atol=1e-4)
    print("KERNEL_OK")
</pallas_src>

<mosaic_0001>
module attributes {stable_mosaic.version = 11 : i64} {
  func.func @_gcn_kernel(%arg0: memref<16x1xi32, #tpu.memory_space<vmem>>, %arg1: memref<16x1xi32, #tpu.memory_space<vmem>>, %arg2: memref<16x32xf32, #tpu.memory_space<vmem>>, %arg3: memref<16x16xf32, #tpu.memory_space<vmem>>, %arg4: memref<32x64xf32, #tpu.memory_space<vmem>>, %arg5: memref<32x8xf32, #tpu.memory_space<vmem>>, %arg6: memref<32x8xf32, #tpu.memory_space<vmem>>, %arg7: memref<1x64xf32, #tpu.memory_space<vmem>>, %arg8: memref<64x64xf32, #tpu.memory_space<vmem>>, %arg9: memref<64x64xf32, #tpu.memory_space<vmem>>, %arg10: memref<1x64xf32, #tpu.memory_space<vmem>>, %arg11: memref<64x32xf32, #tpu.memory_space<vmem>>, %arg12: memref<1x32xf32, #tpu.memory_space<vmem>>, %arg13: memref<32x16xf32, #tpu.memory_space<vmem>>, %arg14: memref<1x16xf32, #tpu.memory_space<vmem>>, %arg15: memref<16x1xf32, #tpu.memory_space<vmem>>, %arg16: memref<1x1xf32, #tpu.memory_space<vmem>>, %arg17: memref<8x1xf32, #tpu.memory_space<vmem>>) attributes {dimension_semantics = [], scalar_prefetch = 0 : i64, scratch_operands = 0 : i64, tpu.core_type = #tpu.core_type<tc>} {
    %0 = tpu.iota {dimensions = array<i32: 1>} : vector<16x128xi32>
    %1 = tpu.iota {dimensions = array<i32: 0>} : vector<16x128xi32>
    %c15_i32 = arith.constant 15 : i32
    %2 = vector.broadcast %c15_i32 : i32 to vector<16x128xi32>
    %3 = arith.andi %0, %2 : vector<16x128xi32>
    %4 = arith.cmpi eq, %3, %1 : vector<16x128xi32>
    %5 = arith.extui %4 : vector<16x128xi1> to vector<16x128xi32>
    %6 = arith.sitofp %5 : vector<16x128xi32> to vector<16x128xf32>
    %7 = tpu.iota {dimensions = array<i32: 1>} : vector<8x128xi32>
    %8 = tpu.iota {dimensions = array<i32: 0>} : vector<8x128xi32>
    %c4_i32 = arith.constant 4 : i32
    %9 = vector.broadcast %c4_i32 : i32 to vector<8x128xi32>
    %10 = arith.shrui %7, %9 : vector<8x128xi32>
    %11 = arith.cmpi eq, %10, %8 : vector<8x128xi32>
    %12 = arith.extui %11 : vector<8x128xi1> to vector<8x128xi32>
    %13 = arith.sitofp %12 : vector<8x128xi32> to vector<8x128xf32>
    %14 = tpu.iota {dimensions = array<i32: 0>} : vector<128x16xi32>
    %15 = tpu.iota {dimensions = array<i32: 1>} : vector<128x16xi32>
    %c15_i32_0 = arith.constant 15 : i32
    %16 = vector.broadcast %c15_i32_0 : i32 to vector<128x16xi32>
    %17 = arith.andi %14, %16 : vector<128x16xi32>
    %18 = arith.cmpi eq, %17, %15 : vector<128x16xi32>
    %19 = arith.extui %18 : vector<128x16xi1> to vector<128x16xi32>
    %20 = arith.sitofp %19 : vector<128x16xi32> to vector<128x16xf32>
    %21 = tpu.iota {dimensions = array<i32: 0>} : vector<128x64xi32>
    %22 = tpu.iota {dimensions = array<i32: 1>} : vector<128x64xi32>
    %c4_i32_1 = arith.constant 4 : i32
    %23 = vector.broadcast %c4_i32_1 : i32 to vector<128x64xi32>
    %24 = arith.shrui %21, %23 : vector<128x64xi32>
    %c3_i32 = arith.constant 3 : i32
    %25 = vector.broadcast %c3_i32 : i32 to vector<128x64xi32>
    %26 = arith.shrui %22, %25 : vector<128x64xi32>
    %27 = arith.cmpi eq, %24, %26 : vector<128x64xi32>
    %28 = arith.extui %27 : vector<128x64xi1> to vector<128x64xi32>
    %29 = arith.sitofp %28 : vector<128x64xi32> to vector<128x64xf32>
    %30 = tpu.iota {dimensions = array<i32: 1>} : vector<16x16xi32>
    %c0 = arith.constant 0 : index
    %c0_2 = arith.constant 0 : index
    %31 = vector.load %arg0[%c0, %c0_2] : memref<16x1xi32, #tpu.memory_space<vmem>>, vector<16x1xi32>
    %32 = vector.broadcast %31 : vector<16x1xi32> to vector<16x16xi32>
    %33 = arith.cmpi eq, %32, %30 : vector<16x16xi32>
    %34 = arith.extui %33 : vector<16x16xi1> to vector<16x16xi32>
    %35 = arith.sitofp %34 : vector<16x16xi32> to vector<16x16xf32>
    %c0_3 = arith.constant 0 : index
    %c0_4 = arith.constant 0 : index
    %36 = vector.load %arg2[%c0_3, %c0_4] : memref<16x32xf32, #tpu.memory_space<vmem>>, vector<16x32xf32>
    %cst = arith.constant dense<0.000000e+00> : vector<16x32xf32>
    %37 = tpu.matmul %35, %36, %cst {dimension_numbers = #tpu.dot_dimension_numbers<[1], [0], [0], [1], [0, 0, 1, 1], [], []>} : vector<16x16xf32>, vector<16x32xf32>, vector<16x32xf32> -> vector<16x32xf32>
    %c0_5 = arith.constant 0 : index
    %c0_6 = arith.constant 0 : index
    %38 = vector.load %arg4[%c0_5, %c0_6] : memref<32x64xf32, #tpu.memory_space<vmem>>, vector<32x64xf32>
    %cst_7 = arith.constant dense<0.000000e+00> : vector<16x64xf32>
    %39 = tpu.matmul %37, %38, %cst_7 {dimension_numbers = #tpu.dot_dimension_numbers<[1], [0], [0], [1], [0, 0, 1, 1], [], []>} : vector<16x32xf32>, vector<32x64xf32>, vector<16x64xf32> -> vector<16x64xf32>
    %c0_8 = arith.constant 0 : index
    %c0_9 = arith.constant 0 : index
    %40 = vector.load %arg5[%c0_8, %c0_9] : memref<32x8xf32, #tpu.memory_space<vmem>>, vector<32x8xf32>
    %cst_10 = arith.constant dense<0.000000e+00> : vector<16x8xf32>
    %41 = tpu.matmul %37, %40, %cst_10 {dimension_numbers = #tpu.dot_dimension_numbers<[1], [0], [0], [1], [0, 0, 1, 1], [], []>} : vector<16x32xf32>, vector<32x8xf32>, vector<16x8xf32> -> vector<16x8xf32>
    %c0_11 = arith.constant 0 : index
    %c0_12 = arith.constant 0 : index
    %42 = vector.load %arg6[%c0_11, %c0_12] : memref<32x8xf32, #tpu.memory_space<vmem>>, vector<32x8xf32>
    %cst_13 = arith.constant dense<0.000000e+00> : vector<16x8xf32>
    %43 = tpu.matmul %37, %42, %cst_13 {dimension_numbers = #tpu.dot_dimension_numbers<[1], [0], [0], [1], [0, 0, 1, 1], [], []>} : vector<16x32xf32>, vector<32x8xf32>, vector<16x8xf32> -> vector<16x8xf32>
    %cst_14 = arith.constant dense<0.000000e+00> : vector<16x128xf32>
    %44 = tpu.matmul %41, %13, %cst_14 {dimension_numbers = #tpu.dot_dimension_numbers<[1], [0], [0], [1], [0, 0, 1, 1], [], []>} : vector<16x8xf32>, vector<8x128xf32>, vector<16x128xf32> -> vector<16x128xf32>
    %cst_15 = arith.constant dense<0.000000e+00> : vector<16x128xf32>
    %45 = tpu.matmul %43, %13, %cst_15 {dimension_numbers = #tpu.dot_dimension_numbers<[1], [0], [0], [1], [0, 0, 1, 1], [], []>} : vector<16x8xf32>, vector<8x128xf32>, vector<16x128xf32> -> vector<16x128xf32>
    %46 = arith.mulf %45, %6 : vector<16x128xf32>
    %cst_16 = arith.constant dense<0.000000e+00> : vector<128xf32>
    %47 = vector.multi_reduction <add>, %46, %cst_16 [0] : vector<16x128xf32> to vector<128xf32>
    %48 = vector.shape_cast %47 : vector<128xf32> to vector<1x128xf32>
    %49 = vector.broadcast %48 : vector<1x128xf32> to vector<16x128xf32>
    %50 = arith.addf %44, %49 : vector<16x128xf32>
    %cst_17 = arith.constant 0.000000e+00 : f32
    %51 = vector.broadcast %cst_17 : f32 to vector<16x128xf32>
    %52 = arith.cmpf oge, %50, %51 : vector<16x128xf32>
    %cst_18 = arith.constant 2.000000e-01 : f32
    %53 = vector.broadcast %cst_18 : f32 to vector<16x128xf32>
    %54 = arith.mulf %53, %50 : vector<16x128xf32>
    %55 = arith.select %52, %50, %54 : vector<16x128xi1>, vector<16x128xf32>
    %c0_19 = arith.constant 0 : index
    %c0_20 = arith.constant 0 : index
    %56 = vector.load %arg3[%c0_19, %c0_20] : memref<16x16xf32, #tpu.memory_space<vmem>>, vector<16x16xf32>
    %cst_21 = arith.constant dense<0.000000e+00> : vector<16x128xf32>
    %57 = tpu.matmul %56, %6, %cst_21 {dimension_numbers = #tpu.dot_dimension_numbers<[1], [0], [0], [1], [0, 0, 1, 1], [], []>} : vector<16x16xf32>, vector<16x128xf32>, vector<16x128xf32> -> vector<16x128xf32>
    %cst_22 = arith.constant 0.000000e+00 : f32
    %58 = vector.broadcast %cst_22 : f32 to vector<16x128xf32>
    %59 = arith.cmpf ogt, %57, %58 : vector<16x128xf32>
    %cst_23 = arith.constant -1.000000e+30 : f32
    %60 = vector.broadcast %cst_23 : f32 to vector<16x128xf32>
    %61 = arith.select %59, %55, %60 : vector<16x128xi1>, vector<16x128xf32>
    %cst_24 = arith.constant dense<0xFF800000> : vector<16xf32>
    %62 = vector.multi_reduction <maximumf>, %61, %cst_24 [1] : vector<16x128xf32> to vector<16xf32>
    %63 = vector.shape_cast %62 : vector<16xf32> to vector<16x1xf32>
    %64 = vector.broadcast %63 : vector<16x1xf32> to vector<16x128xf32>
    %65 = arith.subf %61, %64 : vector<16x128xf32>
    %66 = math.exp %65 : vector<16x128xf32>
    %cst_25 = arith.constant dense<0.000000e+00> : vector<128x64xf32>
    %67 = tpu.matmul %20, %39, %cst_25 {dimension_numbers = #tpu.dot_dimension_numbers<[1], [0], [0], [1], [0, 0, 1, 1], [], []>} : vector<128x16xf32>, vector<16x64xf32>, vector<128x64xf32> -> vector<128x64xf32>
    %68 = arith.mulf %67, %29 : vector<128x64xf32>
    %cst_26 = arith.constant dense<0.000000e+00> : vector<16x64xf32>
    %69 = tpu.matmul %66, %68, %cst_26 {dimension_numbers = #tpu.dot_dimension_numbers<[1], [0], [0], [1], [0, 0, 1, 1], [], []>} : vector<16x128xf32>, vector<128x64xf32>, vector<16x64xf32> -> vector<16x64xf32>
    %cst_27 = arith.constant dense<0.000000e+00> : vector<16x64xf32>
    %70 = tpu.matmul %66, %29, %cst_27 {dimension_numbers = #tpu.dot_dimension_numbers<[1], [0], [0], [1], [0, 0, 1, 1], [], []>} : vector<16x128xf32>, vector<128x64xf32>, vector<16x64xf32> -> vector<16x64xf32>
    %71 = tpu.reciprocal %70 : vector<16x64xf32> -> vector<16x64xf32>
    %72 = arith.mulf %69, %71 : vector<16x64xf32>
    %c0_28 = arith.constant 0 : index
    %c0_29 = arith.constant 0 : index
    %73 = vector.load %arg7[%c0_28, %c0_29] : memref<1x64xf32, #tpu.memory_space<vmem>>, vector<1x64xf32>
    %74 = vector.broadcast %73 : vector<1x64xf32> to vector<16x64xf32>
    %75 = arith.addf %72, %74 : vector<16x64xf32>
    %cst_30 = arith.constant 0.000000e+00 : f32
    %76 = vector.broadcast %cst_30 : f32 to vector<16x64xf32>
    %77 = arith.maximumf %75, %76 : vector<16x64xf32>
    %78 = tpu.iota {dimensions = array<i32: 1>} : vector<16x16xi32>
    %c0_31 = arith.constant 0 : index
    %c0_32 = arith.constant 0 : index
    %79 = vector.load %arg1[%c0_31, %c0_32] : memref<16x1xi32, #tpu.memory_space<vmem>>, vector<16x1xi32>
    %80 = vector.broadcast %79 : vector<16x1xi32> to vector<16x16xi32>
    %81 = arith.cmpi eq, %80, %78 : vector<16x16xi32>
    %82 = arith.extui %81 : vector<16x16xi1> to vector<16x16xi32>
    %83 = arith.sitofp %82 : vector<16x16xi32> to vector<16x16xf32>
    %cst_33 = arith.constant dense<0.000000e+00> : vector<16x64xf32>
    %84 = tpu.matmul %83, %77, %cst_33 {dimension_numbers = #tpu.dot_dimension_numbers<[1], [0], [0], [1], [0, 0, 1, 1], [], []>} : vector<16x16xf32>, vector<16x64xf32>, vector<16x64xf32> -> vector<16x64xf32>
    %85 = vector.extract_strided_slice %84 {offsets = [0, 0], sizes = [8, 64], strides = [1, 1]} : vector<16x64xf32> to vector<8x64xf32>
    %86 = vector.extract_strided_slice %84 {offsets = [8, 0], sizes = [8, 64], strides = [1, 1]} : vector<16x64xf32> to vector<8x64xf32>
    %c0_34 = arith.constant 0 : index
    %c0_35 = arith.constant 0 : index
    %87 = vector.load %arg8[%c0_34, %c0_35] : memref<64x64xf32, #tpu.memory_space<vmem>>, vector<64x64xf32>
    %cst_36 = arith.constant dense<0.000000e+00> : vector<8x64xf32>
    %88 = tpu.matmul %85, %87, %cst_36 {dimension_numbers = #tpu.dot_dimension_numbers<[1], [0], [0], [1], [0, 0, 1, 1], [], []>} : vector<8x64xf32>, vector<64x64xf32>, vector<8x64xf32> -> vector<8x64xf32>
    %c0_37 = arith.constant 0 : index
    %c0_38 = arith.constant 0 : index
    %89 = vector.load %arg9[%c0_37, %c0_38] : memref<64x64xf32, #tpu.memory_space<vmem>>, vector<64x64xf32>
    %cst_39 = arith.constant dense<0.000000e+00> : vector<8x64xf32>
    %90 = tpu.matmul %86, %89, %cst_39 {dimension_numbers = #tpu.dot_dimension_numbers<[1], [0], [0], [1], [0, 0, 1, 1], [], []>} : vector<8x64xf32>, vector<64x64xf32>, vector<8x64xf32> -> vector<8x64xf32>
    %91 = arith.addf %88, %90 : vector<8x64xf32>
    %c0_40 = arith.constant 0 : index
    %c0_41 = arith.constant 0 : index
    %92 = vector.load %arg10[%c0_40, %c0_41] : memref<1x64xf32, #tpu.memory_space<vmem>>, vector<1x64xf32>
    %93 = vector.broadcast %92 : vector<1x64xf32> to vector<8x64xf32>
    %94 = arith.addf %91, %93 : vector<8x64xf32>
    %cst_42 = arith.constant 0.000000e+00 : f32
    %95 = vector.broadcast %cst_42 : f32 to vector<8x64xf32>
    %96 = arith.maximumf %94, %95 : vector<8x64xf32>
    %c0_43 = arith.constant 0 : index
    %c0_44 = arith.constant 0 : index
    %97 = vector.load %arg11[%c0_43, %c0_44] : memref<64x32xf32, #tpu.memory_space<vmem>>, vector<64x32xf32>
    %cst_45 = arith.constant dense<0.000000e+00> : vector<8x32xf32>
    %98 = tpu.matmul %96, %97, %cst_45 {dimension_numbers = #tpu.dot_dimension_numbers<[1], [0], [0], [1], [0, 0, 1, 1], [], []>} : vector<8x64xf32>, vector<64x32xf32>, vector<8x32xf32> -> vector<8x32xf32>
    %c0_46 = arith.constant 0 : index
    %c0_47 = arith.constant 0 : index
    %99 = vector.load %arg12[%c0_46, %c0_47] : memref<1x32xf32, #tpu.memory_space<vmem>>, vector<1x32xf32>
    %100 = vector.broadcast %99 : vector<1x32xf32> to vector<8x32xf32>
    %101 = arith.addf %98, %100 : vector<8x32xf32>
    %cst_48 = arith.constant 0.000000e+00 : f32
    %102 = vector.broadcast %cst_48 : f32 to vector<8x32xf32>
    %103 = arith.maximumf %101, %102 : vector<8x32xf32>
    %c0_49 = arith.constant 0 : index
    %c0_50 = arith.constant 0 : index
    %104 = vector.load %arg13[%c0_49, %c0_50] : memref<32x16xf32, #tpu.memory_space<vmem>>, vector<32x16xf32>
    %cst_51 = arith.constant dense<0.000000e+00> : vector<8x16xf32>
    %105 = tpu.matmul %103, %104, %cst_51 {dimension_numbers = #tpu.dot_dimension_numbers<[1], [0], [0], [1], [0, 0, 1, 1], [], []>} : vector<8x32xf32>, vector<32x16xf32>, vector<8x16xf32> -> vector<8x16xf32>
    %c0_52 = arith.constant 0 : index
    %c0_53 = arith.constant 0 : index
    %106 = vector.load %arg14[%c0_52, %c0_53] : memref<1x16xf32, #tpu.memory_space<vmem>>, vector<1x16xf32>
    %107 = vector.broadcast %106 : vector<1x16xf32> to vector<8x16xf32>
    %108 = arith.addf %105, %107 : vector<8x16xf32>
    %cst_54 = arith.constant 0.000000e+00 : f32
    %109 = vector.broadcast %cst_54 : f32 to vector<8x16xf32>
    %110 = arith.maximumf %108, %109 : vector<8x16xf32>
    %c0_55 = arith.constant 0 : index
    %c0_56 = arith.constant 0 : index
    %111 = vector.load %arg15[%c0_55, %c0_56] : memref<16x1xf32, #tpu.memory_space<vmem>>, vector<16x1xf32>
    %cst_57 = arith.constant dense<0.000000e+00> : vector<8x1xf32>
    %112 = tpu.matmul %110, %111, %cst_57 {dimension_numbers = #tpu.dot_dimension_numbers<[1], [0], [0], [1], [0, 0, 1, 1], [], []>} : vector<8x16xf32>, vector<16x1xf32>, vector<8x1xf32> -> vector<8x1xf32>
    %c0_58 = arith.constant 0 : index
    %c0_59 = arith.constant 0 : index
    %113 = vector.load %arg16[%c0_58, %c0_59] : memref<1x1xf32, #tpu.memory_space<vmem>>, vector<1x1xf32>
    %114 = vector.broadcast %113 : vector<1x1xf32> to vector<8x1xf32>
    %115 = arith.addf %112, %114 : vector<8x1xf32>
    %c0_60 = arith.constant 0 : index
    %c0_61 = arith.constant 0 : index
    %116 = vector.load %arg17[%c0_60, %c0_61] : memref<8x1xf32, #tpu.memory_space<vmem>>, vector<8x1xf32>
    tpu.vector_store %arg17[%c0_60, %c0_61], %115 {strides = array<i32>} : memref<8x1xf32, #tpu.memory_space<vmem>>, vector<8x1xf32>,
    return
  }
}

</mosaic_0001>

<llo_original>
// kernel: tpu_custom_call.1
$region0: #{tpu_custom_call.1}
  #allocation0 [shape = 'u32[]', space=smem, size = 0x4, offset = 0x4, fixed_abs, tag = 'smem constant byte address 0x4 - core index']
  #allocation1 [shape = 'u32[72,128]{1,0:T(1,128)}', space=vmem, size = 0x9000, scoped, tag = 'internal scratch']
  #allocation2 [shape = 'f32[1,1]{1,0:T(1,128)S(1)}', space=vmem, size = 0x200, scoped, tag = 'scoped memory for tpu_custom_call.1']
  %s0 = inlined_call_operand.vmem [shape: s32[16,1], index: 0, kind: input, shape index: {}]
  %s1 = inlined_call_operand.vmem [shape: s32[16,1], index: 1, kind: input, shape index: {}]
  %s2 = inlined_call_operand.vmem [shape: f32[16,32], index: 2, kind: input, shape index: {}]
  %s3 = inlined_call_operand.vmem [shape: f32[16,16], index: 3, kind: input, shape index: {}]
  %s4 = inlined_call_operand.vmem [shape: f32[32,64], index: 4, kind: input, shape index: {}]
  %s5 = inlined_call_operand.vmem [shape: f32[32,8], index: 5, kind: input, shape index: {}]
  %s6 = inlined_call_operand.vmem [shape: f32[32,8], index: 6, kind: input, shape index: {}]
  %s7 = inlined_call_operand.vmem [shape: f32[1,64], index: 7, kind: input, shape index: {}]
  %s8 = inlined_call_operand.vmem [shape: f32[64,64], index: 8, kind: input, shape index: {}]
  %s9 = inlined_call_operand.hbm [shape: f32[64,64], index: 9, kind: input, shape index: {}]
  %s10 = inlined_call_operand.vmem [shape: f32[1,64], index: 10, kind: input, shape index: {}]
  %s11 = inlined_call_operand.vmem [shape: f32[64,32], index: 11, kind: input, shape index: {}]
  %s12 = inlined_call_operand.vmem [shape: f32[1,32], index: 12, kind: input, shape index: {}]
  %s13 = inlined_call_operand.vmem [shape: f32[32,16], index: 13, kind: input, shape index: {}]
  %s14 = inlined_call_operand.vmem [shape: f32[1,16], index: 14, kind: input, shape index: {}]
  %s15 = inlined_call_operand.vmem [shape: f32[16,1], index: 15, kind: input, shape index: {}]
  %s16 = inlined_call_operand.<no memory space> [shape: f32[1,1], index: 16, kind: input, shape index: {}]
  %s17 = inlined_call_operand.vmem [shape: f32[8,1], index: 17, kind: output, shape index: {}]
  %s18 = sld [smem:[#allocation0]]
  $region82: #{tpu_custom_call.1} parent=0
    _
  %s20 = ssub.s32 1, %s18
  %s21 = scalar_select 0, %s20, %s18
  %v22 = vstv %s16
  %23 = vst [vmem:[#allocation2] sm:$0x1] %v22
  $region1: #{tpu_custom_call.1} parent=0
    #allocation3 [shape = 'u8[32768]{0}', space=vmem, size = 0x8000, scoped, tag = 'input window, operand 9, single buffered']
    #allocation4 [shape = 's32[1]{0}', space=sflag, size = 0x4, scoped, tag = 'scoped memory for tpu_custom_call.1']
    %24 = vsyncpa [#allocation4], 0
    // Predicated region
    $region2: #{tpu_custom_call.1} parent=1 // pred_check
      _
    $region3: #{tpu_custom_call.1} parent=1 // pred_check_branch
      %26 = sbr.rel (0) target = $region5
    $region4: #{tpu_custom_call.1} parent=1 // pred_region
      _
    $region5: #{tpu_custom_call.1} parent=1 // pred_fallthru
      _
    // Predicated region
    $region6: #{tpu_custom_call.1} parent=1 // pred_check
      _
    $region7: #{tpu_custom_call.1} parent=1 // pred_check_branch
      %28 = sbr.rel (0) target = $region9
    $region8: #{tpu_custom_call.1} parent=1 // pred_region
      _
    $region9: #{tpu_custom_call.1} parent=1 // pred_fallthru
      _
    // Predicated region
    $region10: #{tpu_custom_call.1} parent=1 // pred_check
      _
    $region11: #{tpu_custom_call.1} parent=1 // pred_check_branch
      %30 = sbr.rel (0) target = $region13
    $region12: #{tpu_custom_call.1} parent=1 // pred_region
      _
    $region13: #{tpu_custom_call.1} parent=1 // pred_fallthru
      _
    // Predicated region
    $region14: #{tpu_custom_call.1} parent=1 // pred_check
      _
    $region15: #{tpu_custom_call.1} parent=1 // pred_check_branch
      %32 = sbr.rel (0) target = $region17
    $region16: #{tpu_custom_call.1} parent=1 // pred_region
      _
    $region17: #{tpu_custom_call.1} parent=1 // pred_fallthru
      _
    // Predicated region
    $region18: #{tpu_custom_call.1} parent=1 // pred_check
      _
    $region19: #{tpu_custom_call.1} parent=1 // pred_check_branch
      %34 = sbr.rel (0) target = $region21
    $region20: #{tpu_custom_call.1} parent=1 // pred_region
      _
    $region21: #{tpu_custom_call.1} parent=1 // pred_fallthru
      _
    // Predicated region
    $region22: #{tpu_custom_call.1} parent=1 // pred_check
      _
    $region23: #{tpu_custom_call.1} parent=1 // pred_check_branch
      %36 = sbr.rel (0) target = $region25
    $region24: #{tpu_custom_call.1} parent=1 // pred_region
      _
    $region25: #{tpu_custom_call.1} parent=1 // pred_fallthru
      _
    // Predicated region
    $region26: #{tpu_custom_call.1} parent=1 // pred_check
      _
    $region27: #{tpu_custom_call.1} parent=1 // pred_check_branch
      %38 = sbr.rel (0) target = $region29
    $region28: #{tpu_custom_call.1} parent=1 // pred_region
      _
    $region29: #{tpu_custom_call.1} parent=1 // pred_fallthru
      _
    // Predicated region
    $region30: #{tpu_custom_call.1} parent=1 // pred_check
      _
    $region31: #{tpu_custom_call.1} parent=1 // pred_check_branch
      %40 = sbr.rel (0) target = $region33
    $region32: #{tpu_custom_call.1} parent=1 // pred_region
      _
    $region33: #{tpu_custom_call.1} parent=1 // pred_fallthru
      _
    // Predicated region
    $region34: #{tpu_custom_call.1} parent=1 // pred_check
      _
    $region35: #{tpu_custom_call.1} parent=1 // pred_check_branch
      %42 = sbr.rel (0) target = $region37
    $region36: #{tpu_custom_call.1} parent=1 // pred_region
      _
    $region37: #{tpu_custom_call.1} parent=1 // pred_fallthru
      _
    // Predicated region
    $region38: #{tpu_custom_call.1} parent=1 // pred_check
      _
    $region39: #{tpu_custom_call.1} parent=1 // pred_check_branch
      %44 = sbr.rel (0) target = $region41
    $region40: #{tpu_custom_call.1} parent=1 // pred_region
      %46 = vsyncadd [#allocation4], 0
      %s47 = sshll.u32 %s9, 4
      %s48 = int_to_ptr.hbm [resolvable:$true] %s47
      %s49 = sshll.u32 [#allocation3], 4
      %s50 = int_to_ptr.vmem [resolvable:$true] %s49
      %55 = dma.hbm_to_vmem [thread:$0]  %s48, 1024, %s50, [#allocation4], 128, 128, 8
    $region41: #{tpu_custom_call.1} parent=1 // pred_fallthru
      _
    // Predicated region
    $region42: #{tpu_custom_call.1} parent=1 // pred_check
      _
    $region43: #{tpu_custom_call.1} parent=1 // pred_check_branch
      %57 = sbr.rel (0) target = $region45
    $region44: #{tpu_custom_call.1} parent=1 // pred_region
      _
    $region45: #{tpu_custom_call.1} parent=1 // pred_fallthru
      _
    // Predicated region
    $region46: #{tpu_custom_call.1} parent=1 // pred_check
      _
    $region47: #{tpu_custom_call.1} parent=1 // pred_check_branch
      %59 = sbr.rel (0) target = $region49
    $region48: #{tpu_custom_call.1} parent=1 // pred_region
      _
    $region49: #{tpu_custom_call.1} parent=1 // pred_fallthru
      _
    // Predicated region
    $region50: #{tpu_custom_call.1} parent=1 // pred_check
      _
    $region51: #{tpu_custom_call.1} parent=1 // pred_check_branch
      %61 = sbr.rel (0) target = $region53
    $region52: #{tpu_custom_call.1} parent=1 // pred_region
      _
    $region53: #{tpu_custom_call.1} parent=1 // pred_fallthru
      _
    // Predicated region
    $region54: #{tpu_custom_call.1} parent=1 // pred_check
      _
    $region55: #{tpu_custom_call.1} parent=1 // pred_check_branch
      %63 = sbr.rel (0) target = $region57
    $region56: #{tpu_custom_call.1} parent=1 // pred_region
      _
    $region57: #{tpu_custom_call.1} parent=1 // pred_fallthru
      _
    // Predicated region
    $region58: #{tpu_custom_call.1} parent=1 // pred_check
      _
    $region59: #{tpu_custom_call.1} parent=1 // pred_check_branch
      %65 = sbr.rel (0) target = $region61
    $region60: #{tpu_custom_call.1} parent=1 // pred_region
      _
    $region61: #{tpu_custom_call.1} parent=1 // pred_fallthru
      _
    // Predicated region
    $region62: #{tpu_custom_call.1} parent=1 // pred_check
      _
    $region63: #{tpu_custom_call.1} parent=1 // pred_check_branch
      %67 = sbr.rel (0) target = $region65
    $region64: #{tpu_custom_call.1} parent=1 // pred_region
      _
    $region65: #{tpu_custom_call.1} parent=1 // pred_fallthru
      _
    // Predicated region
    $region66: #{tpu_custom_call.1} parent=1 // pred_check
      _
    $region67: #{tpu_custom_call.1} parent=1 // pred_check_branch
      %69 = sbr.rel (0) target = $region69
    $region68: #{tpu_custom_call.1} parent=1 // pred_region
      _
    $region69: #{tpu_custom_call.1} parent=1 // pred_fallthru
      _
    // Predicated region
    $region70: #{tpu_custom_call.1} parent=1 // pred_check
      _
    $region71: #{tpu_custom_call.1} parent=1 // pred_check_branch
      %71 = sbr.rel (0) target = $region73
    $region72: #{tpu_custom_call.1} parent=1 // pred_region
      %73 = dma.done [#allocation4], 1024
    $region73: #{tpu_custom_call.1} parent=1 // pred_fallthru
      _
    %v74 = vlaneseq
    %v75 = vand.u32 %v74, 127
    %v76 = vlaneseq
    %v77 = vshrl.u32 %v76, 7
    %v78 = vadd.s32 %v77, 8
    %v79 = vand.u32 %v75, 15
    %vm80 = vcmp.eq.s32.totalorder %v79, %v77
    %vm81 = vcmp.eq.s32.totalorder %v79, %v78
    %v82 = vsel %vm80, 1, 0
    %v83 = vsel %vm81, 1, 0
    %v84 = vcvt.s32.f32 %v82
    %v85 = vcvt.s32.f32 %v83
    %v86 = vshrl.u32 %v75, 4
    %vm87 = vcmp.eq.s32.totalorder %v86, %v77
    %v88 = vsel %vm87, 1, 0
    %v89 = vcvt.s32.f32 %v88
    %v90 = vadd.s32 %v77, 16
    %v91 = vadd.s32 %v77, 24
    %v92 = vadd.s32 %v77, 32
    %v93 = vadd.s32 %v77, 40
    %v94 = vadd.s32 %v77, 48
    %v95 = vadd.s32 %v77, 56
    %v96 = vadd.s32 %v77, 64
    %v97 = vadd.s32 %v77, 72
    %v98 = vadd.s32 %v77, 80
    %v99 = vadd.s32 %v77, 88
    %v100 = vadd.s32 %v77, 96
    %v101 = vadd.s32 %v77, 104
    %v102 = vadd.s32 %v77, 112
    %v103 = vadd.s32 %v77, 120
    %v104 = vand.u32 %v77, 15
    %v105 = vand.u32 %v78, 15
    %v106 = vand.u32 %v90, 15
    %v107 = vand.u32 %v91, 15
    %v108 = vand.u32 %v92, 15
    %v109 = vand.u32 %v93, 15
    %v110 = vand.u32 %v94, 15
    %v111 = vand.u32 %v95, 15
    %v112 = vand.u32 %v96, 15
    %v113 = vand.u32 %v97, 15
    %v114 = vand.u32 %v98, 15
    %v115 = vand.u32 %v99, 15
    %v116 = vand.u32 %v100, 15
    %v117 = vand.u32 %v101, 15
    %v118 = vand.u32 %v102, 15
    %v119 = vand.u32 %v103, 15
    %vm120 = vcmp.eq.s32.totalorder %v104, %v75
    %vm121 = vcmp.eq.s32.totalorder %v105, %v75
    %vm122 = vcmp.eq.s32.totalorder %v106, %v75
    %vm123 = vcmp.eq.s32.totalorder %v107, %v75
    %vm124 = vcmp.eq.s32.totalorder %v108, %v75
    %vm125 = vcmp.eq.s32.totalorder %v109, %v75
    %vm126 = vcmp.eq.s32.totalorder %v110, %v75
    %vm127 = vcmp.eq.s32.totalorder %v111, %v75
    %vm128 = vcmp.eq.s32.totalorder %v112, %v75
    %vm129 = vcmp.eq.s32.totalorder %v113, %v75
    %vm130 = vcmp.eq.s32.totalorder %v114, %v75
    %vm131 = vcmp.eq.s32.totalorder %v115, %v75
    %vm132 = vcmp.eq.s32.totalorder %v116, %v75
    %vm133 = vcmp.eq.s32.totalorder %v117, %v75
    %vm134 = vcmp.eq.s32.totalorder %v118, %v75
    %vm135 = vcmp.eq.s32.totalorder %v119, %v75
    %v136 = vsel %vm120, 1, 0
    %v137 = vsel %vm121, 1, 0
    %v138 = vsel %vm122, 1, 0
    %v139 = vsel %vm123, 1, 0
    %v140 = vsel %vm124, 1, 0
    %v141 = vsel %vm125, 1, 0
    %v142 = vsel %vm126, 1, 0
    %v143 = vsel %vm127, 1, 0
    %v144 = vsel %vm128, 1, 0
    %v145 = vsel %vm129, 1, 0
    %v146 = vsel %vm130, 1, 0
    %v147 = vsel %vm131, 1, 0
    %v148 = vsel %vm132, 1, 0
    %v149 = vsel %vm133, 1, 0
    %v150 = vsel %vm134, 1, 0
    %v151 = vsel %vm135, 1, 0
    %v152 = vcvt.s32.f32 %v136
    %v153 = vcvt.s32.f32 %v137
    %v154 = vcvt.s32.f32 %v138
    %v155 = vcvt.s32.f32 %v139
    %v156 = vcvt.s32.f32 %v140
    %v157 = vcvt.s32.f32 %v141
    %v158 = vcvt.s32.f32 %v142
    %v159 = vcvt.s32.f32 %v143
    %v160 = vcvt.s32.f32 %v144
    %v161 = vcvt.s32.f32 %v145
    %v162 = vcvt.s32.f32 %v146
    %v163 = vcvt.s32.f32 %v147
    %v164 = vcvt.s32.f32 %v148
    %v165 = vcvt.s32.f32 %v149
    %v166 = vcvt.s32.f32 %v150
    %v167 = vcvt.s32.f32 %v151
    %v168 = vshrl.u32 %v77, 4
    %v169 = vshrl.u32 %v78, 4
    %v170 = vshrl.u32 %v90, 4
    %v171 = vshrl.u32 %v91, 4
    %v172 = vshrl.u32 %v92, 4
    %v173 = vshrl.u32 %v93, 4
    %v174 = vshrl.u32 %v94, 4
    %v175 = vshrl.u32 %v95, 4
    %v176 = vshrl.u32 %v96, 4
    %v177 = vshrl.u32 %v97, 4
    %v178 = vshrl.u32 %v98, 4
    %v179 = vshrl.u32 %v99, 4
    %v180 = vshrl.u32 %v100, 4
    %v181 = vshrl.u32 %v101, 4
    %v182 = vshrl.u32 %v102, 4
    %v183 = vshrl.u32 %v103, 4
    %v184 = vshrl.u32 %v75, 3
    %vm185 = vcmp.eq.s32.totalorder %v168, %v184
    %vm186 = vcmp.eq.s32.totalorder %v169, %v184
    %vm187 = vcmp.eq.s32.totalorder %v170, %v184
    %vm188 = vcmp.eq.s32.totalorder %v171, %v184
    %vm189 = vcmp.eq.s32.totalorder %v172, %v184
    %vm190 = vcmp.eq.s32.totalorder %v173, %v184
    %vm191 = vcmp.eq.s32.totalorder %v174, %v184
    %vm192 = vcmp.eq.s32.totalorder %v175, %v184
    %vm193 = vcmp.eq.s32.totalorder %v176, %v184
    %vm194 = vcmp.eq.s32.totalorder %v177, %v184
    %vm195 = vcmp.eq.s32.totalorder %v178, %v184
    %vm196 = vcmp.eq.s32.totalorder %v179, %v184
    %vm197 = vcmp.eq.s32.totalorder %v180, %v184
    %vm198 = vcmp.eq.s32.totalorder %v181, %v184
    %vm199 = vcmp.eq.s32.totalorder %v182, %v184
    %vm200 = vcmp.eq.s32.totalorder %v183, %v184
    %v201 = vsel %vm185, 1, 0
    %v202 = vsel %vm186, 1, 0
    %v203 = vsel %vm187, 1, 0
    %v204 = vsel %vm188, 1, 0
    %v205 = vsel %vm189, 1, 0
    %v206 = vsel %vm190, 1, 0
    %v207 = vsel %vm191, 1, 0
    %v208 = vsel %vm192, 1, 0
    %v209 = vsel %vm193, 1, 0
    %v210 = vsel %vm194, 1, 0
    %v211 = vsel %vm195, 1, 0
    %v212 = vsel %vm196, 1, 0
    %v213 = vsel %vm197, 1, 0
    %v214 = vsel %vm198, 1, 0
    %v215 = vsel %vm199, 1, 0
    %v216 = vsel %vm200, 1, 0
    %v217 = vcvt.s32.f32 %v201
    %v218 = vcvt.s32.f32 %v202
    %v219 = vcvt.s32.f32 %v203
    %v220 = vcvt.s32.f32 %v204
    %v221 = vcvt.s32.f32 %v205
    %v222 = vcvt.s32.f32 %v206
    %v223 = vcvt.s32.f32 %v207
    %v224 = vcvt.s32.f32 %v208
    %v225 = vcvt.s32.f32 %v209
    %v226 = vcvt.s32.f32 %v210
    %v227 = vcvt.s32.f32 %v211
    %v228 = vcvt.s32.f32 %v212
    %v229 = vcvt.s32.f32 %v213
    %v230 = vcvt.s32.f32 %v214
    %v231 = vcvt.s32.f32 %v215
    %v232 = vcvt.s32.f32 %v216
    %v233 = vld [vmem:[%s0] sm:$0xff]
    %v234 = vld [vmem:[%s0 + $0x8] sm:$0xff]
    %235 = vset.pattern.permute.xlu0 0
    %236 = vperm.xlu0 %235, %v233
    %v237 = vpop.permute.xlu0 %236
    %238 = vset.pattern.permute.xlu0 0
    %239 = vperm.xlu0 %238, %v234
    %v240 = vpop.permute.xlu0 %239
    %vm241 = vcmp.eq.s32.totalorder %v237, %v75
    %vm242 = vcmp.eq.s32.totalorder %v240, %v75
    %v243 = vsel %vm241, 1, 0
    %v244 = vsel %vm242, 1, 0
    %v245 = vcvt.s32.f32 %v243
    %v246 = vcvt.s32.f32 %v244
    %v247 = vld [vmem:[%s2] sm:$0xff]
    %v248 = vld [vmem:[%s2 + $0x8] sm:$0xff]
    %vm249 = vcmask 130048
    %v251 = vsel %vm249, %v245, 0
    %v254 = vsel %vm249, %v246, 0
    %256 = vmatpush.msra.mxu0 0.0
    %257 = vmatpush.msra.mxu0 0.0
    %258 = vmatpush.msra.mxu0 0.0
    %259 = vmatpush.msra.mxu0 0.0
    %260 = vmatpush.msra.mxu0 0.0
    %261 = vmatpush.msra.mxu0 0.0
    %262 = vmatpush.msra.mxu0 0.0
    %263 = vmatpush.msra.mxu0 0.0
    %264 = vmatpush.msra.mxu0 0.0
    %265 = vmatpush.msra.mxu0 0.0
    %266 = vmatpush.msra.mxu0 0.0
    %267 = vmatpush.msra.mxu0 0.0
    %268 = vmatpush.msra.mxu0 0.0
    %269 = vmatpush.msra.mxu0 0.0
    %270 = vmatpush.msra.mxu0 %v248
    %271 = vmatpush.msra.mxu0 %v247
    %272 = vmatmul.f32.gmra.mxu0 %v251
    %v273 = vpop.f32.mrf.mxu0
    %v274 = vadd.f32 0.0, %v273
    %275 = vmatmul.f32.gmra.mxu0 %v254
    %v276 = vpop.f32.mrf.mxu0
    %v277 = vadd.f32 0.0, %v276
    %278 = vdwg.mxu0
    %v279 = vld [vmem:[%s4] sm:$0xff]
    %v280 = vld [vmem:[%s4 + $0x8] sm:$0xff]
    %v281 = vld [vmem:[%s4 + $0x10] sm:$0xff]
    %v282 = vld [vmem:[%s4 + $0x18] sm:$0xff]
    %vm283 = vcmask 261120
    %v285 = vsel %vm283, %v274, 0
    %v288 = vsel %vm283, %v277, 0
    %290 = vmatpush.msra.mxu0 0.0
    %291 = vmatpush.msra.mxu0 0.0
    %292 = vmatpush.msra.mxu0 0.0
    %293 = vmatpush.msra.mxu0 0.0
    %294 = vmatpush.msra.mxu0 0.0
    %295 = vmatpush.msra.mxu0 0.0
    %296 = vmatpush.msra.mxu0 0.0
    %297 = vmatpush.msra.mxu0 0.0
    %298 = vmatpush.msra.mxu0 0.0
    %299 = vmatpush.msra.mxu0 0.0
    %300 = vmatpush.msra.mxu0 0.0
    %301 = vmatpush.msra.mxu0 0.0
    %302 = vmatpush.msra.mxu0 %v282
    %303 = vmatpush.msra.mxu0 %v281
    %304 = vmatpush.msra.mxu0 %v280
    %305 = vmatpush.msra.mxu0 %v279
    %306 = vmatmul.f32.gmra.mxu0 %v285
    %v307 = vpop.f32.mrf.mxu0
    %v308 = vadd.f32 0.0, %v307
    %309 = vmatmul.f32.gmra.mxu0 %v288
    %v310 = vpop.f32.mrf.mxu0
    %v311 = vadd.f32 0.0, %v310
    %312 = vdwg.mxu0
    %v313 = vld [vmem:[%s5] sm:$0xff]
    %v314 = vld [vmem:[%s5 + $0x8] sm:$0xff]
    %v315 = vld [vmem:[%s5 + $0x10] sm:$0xff]
    %v316 = vld [vmem:[%s5 + $0x18] sm:$0xff]
    %317 = vmatpush.msra.mxu0 0.0
    %318 = vmatpush.msra.mxu0 0.0
    %319 = vmatpush.msra.mxu0 0.0
    %320 = vmatpush.msra.mxu0 0.0
    %321 = vmatpush.msra.mxu0 0.0
    %322 = vmatpush.msra.mxu0 0.0
    %323 = vmatpush.msra.mxu0 0.0
    %324 = vmatpush.msra.mxu0 0.0
    %325 = vmatpush.msra.mxu0 0.0
    %326 = vmatpush.msra.mxu0 0.0
    %327 = vmatpush.msra.mxu0 0.0
    %328 = vmatpush.msra.mxu0 0.0
    %329 = vmatpush.msra.mxu0 %v316
    %330 = vmatpush.msra.mxu0 %v315
    %331 = vmatpush.msra.mxu0 %v314
    %332 = vmatpush.msra.mxu0 %v313
    %333 = vmatmul.f32.gmra.mxu0 %v285
    %v334 = vpop.f32.mrf.mxu0
    %v335 = vadd.f32 0.0, %v334
    %336 = vmatmul.f32.gmra.mxu0 %v288
    %v337 = vpop.f32.mrf.mxu0
    %v338 = vadd.f32 0.0, %v337
    %339 = vdwg.mxu0
    %v340 = vld [vmem:[%s6] sm:$0xff]
    %v341 = vld [vmem:[%s6 + $0x8] sm:$0xff]
    %v342 = vld [vmem:[%s6 + $0x10] sm:$0xff]
    %v343 = vld [vmem:[%s6 + $0x18] sm:$0xff]
    %344 = vmatpush.msra.mxu0 0.0
    %345 = vmatpush.msra.mxu0 0.0
    %346 = vmatpush.msra.mxu0 0.0
    %347 = vmatpush.msra.mxu0 0.0
    %348 = vmatpush.msra.mxu0 0.0
    %349 = vmatpush.msra.mxu0 0.0
    %350 = vmatpush.msra.mxu0 0.0
    %351 = vmatpush.msra.mxu0 0.0
    %352 = vmatpush.msra.mxu0 0.0
    %353 = vmatpush.msra.mxu0 0.0
    %354 = vmatpush.msra.mxu0 0.0
    %355 = vmatpush.msra.mxu0 0.0
    %356 = vmatpush.msra.mxu0 %v343
    %357 = vmatpush.msra.mxu0 %v342
    %358 = vmatpush.msra.mxu0 %v341
    %359 = vmatpush.msra.mxu0 %v340
    %360 = vmatmul.f32.gmra.mxu0 %v285
    %v361 = vpop.f32.mrf.mxu0
    %v362 = vadd.f32 0.0, %v361
    %363 = vmatmul.f32.gmra.mxu0 %v288
    %v364 = vpop.f32.mrf.mxu0
    %v365 = vadd.f32 0.0, %v364
    %366 = vdwg.mxu0
    %vm367 = vcmask 64512
    %v369 = vsel %vm367, %v362, 0
    %v372 = vsel %vm367, %v365, 0
    %374 = vmatpush.msra.mxu0 0.0
    %375 = vmatpush.msra.mxu0 0.0
    %376 = vmatpush.msra.mxu0 0.0
    %377 = vmatpush.msra.mxu0 0.0
    %378 = vmatpush.msra.mxu0 0.0
    %379 = vmatpush.msra.mxu0 0.0
    %380 = vmatpush.msra.mxu0 0.0
    %381 = vmatpush.msra.mxu0 0.0
    %382 = vmatpush.msra.mxu0 0.0
    %383 = vmatpush.msra.mxu0 0.0
    %384 = vmatpush.msra.mxu0 0.0
    %385 = vmatpush.msra.mxu0 0.0
    %386 = vmatpush.msra.mxu0 0.0
    %387 = vmatpush.msra.mxu0 0.0
    %388 = vmatpush.msra.mxu0 0.0
    %389 = vmatpush.msra.mxu0 %v89
    %390 = vmatmul.f32.gmra.mxu0 %v369
    %v391 = vpop.f32.mrf.mxu0
    %v392 = vadd.f32 0.0, %v391
    %393 = vmatmul.f32.gmra.mxu0 %v372
    %v394 = vpop.f32.mrf.mxu0
    %v395 = vadd.f32 0.0, %v394
    %396 = vdwg.mxu0
    %v397 = vmul.f32 %v392, %v84
    %v398 = vmul.f32 %v395, %v85
    %v399 = vadd.f32 %v397, %v398
    %v400 = vrot.slane %v399, 4
    %v401 = vadd.f32 %v399, %v400
    %v402 = vrot.slane %v401, 2
    %v403 = vadd.f32 %v401, %v402
    %v404 = vrot.slane %v403, 1
    %v405 = vadd.f32 %v403, %v404
    %v407 = vsel %vm367, %v335, 0
    %v410 = vsel %vm367, %v338, 0
    %412 = vmatpush.msra.mxu0 0.0
    %413 = vmatpush.msra.mxu0 0.0
    %414 = vmatpush.msra.mxu0 0.0
    %415 = vmatpush.msra.mxu0 0.0
    %416 = vmatpush.msra.mxu0 0.0
    %417 = vmatpush.msra.mxu0 0.0
    %418 = vmatpush.msra.mxu0 0.0
    %419 = vmatpush.msra.mxu0 0.0
    %420 = vmatpush.msra.mxu0 0.0
    %421 = vmatpush.msra.mxu0 0.0
    %422 = vmatpush.msra.mxu0 0.0
    %423 = vmatpush.msra.mxu0 0.0
    %424 = vmatpush.msra.mxu0 0.0
    %425 = vmatpush.msra.mxu0 0.0
    %426 = vmatpush.msra.mxu0 0.0
    %427 = vmatpush.msra.mxu0 %v89
    %428 = vmatmul.f32.gmra.mxu0 %v407
    %v429 = vpop.f32.mrf.mxu0
    %v430 = vadd.f32 %v405, %v429
    %431 = vmatmul.f32.gmra.mxu0 %v410
    %v432 = vpop.f32.mrf.mxu0
    %v433 = vadd.f32 %v405, %v432
    %434 = vdwg.mxu0
    %vm435 = vcmp.ge.f32.partialorder %v430, 0.0
    %vm436 = vcmp.ge.f32.partialorder %v433, 0.0
    %v437 = vmul.f32 %v430, 0.2
    %v438 = vmul.f32 %v433, 0.2
    %v439 = vsel %vm435, %v430, %v437
    %v440 = vsel %vm436, %v433, %v438
    %v441 = vld [vmem:[%s3] sm:$0xff]
    %v442 = vld [vmem:[%s3 + $0x8] sm:$0xff]
    %v444 = vsel %vm249, %v441, 0
    %v447 = vsel %vm249, %v442, 0
    %449 = vmatpush.msra.mxu0 0.0
    %450 = vmatpush.msra.mxu0 0.0
    %451 = vmatpush.msra.mxu0 0.0
    %452 = vmatpush.msra.mxu0 0.0
    %453 = vmatpush.msra.mxu0 0.0
    %454 = vmatpush.msra.mxu0 0.0
    %455 = vmatpush.msra.mxu0 0.0
    %456 = vmatpush.msra.mxu0 0.0
    %457 = vmatpush.msra.mxu0 0.0
    %458 = vmatpush.msra.mxu0 0.0
    %459 = vmatpush.msra.mxu0 0.0
    %460 = vmatpush.msra.mxu0 0.0
    %461 = vmatpush.msra.mxu0 0.0
    %462 = vmatpush.msra.mxu0 0.0
    %463 = vmatpush.msra.mxu0 %v85
    %464 = vmatpush.msra.mxu0 %v84
    %465 = vmatmul.f32.gmra.mxu0 %v444
    %v466 = vpop.f32.mrf.mxu0
    %v467 = vadd.f32 0.0, %v466
    %468 = vmatmul.f32.gmra.mxu0 %v447
    %v469 = vpop.f32.mrf.mxu0
    %v470 = vadd.f32 0.0, %v469
    %471 = vdwg.mxu0
    %vm472 = vcmp.gt.f32.partialorder %v467, 0.0
    %vm473 = vcmp.gt.f32.partialorder %v470, 0.0
    %v474 = vsel %vm472, %v439, -1e+30
    %v475 = vsel %vm473, %v440, -1e+30
    %476 = vmax.xlane.f32.xlu0 %v474
    %v477 = vpop.xlane.xlu0 %476
    %478 = vmax.xlane.f32.xlu0 %v475
    %v479 = vpop.xlane.xlu0 %478
    %v480 = vsub.f32 %v474, %v477
    %v481 = vsub.f32 %v475, %v479
    %v482 = vmul.f32 %v480, 1.442695
    %v483 = vpow.pop %v482
    %v484 = vmul.f32 %v481, 1.442695
    %v485 = vpow.pop %v484
    %v487 = vsel %vm249, %v152, 0
    %v490 = vsel %vm249, %v153, 0
    %v493 = vsel %vm249, %v154, 0
    %v496 = vsel %vm249, %v155, 0
    %v499 = vsel %vm249, %v156, 0
    %v502 = vsel %vm249, %v157, 0
    %v505 = vsel %vm249, %v158, 0
    %v508 = vsel %vm249, %v159, 0
    %v511 = vsel %vm249, %v160, 0
    %v514 = vsel %vm249, %v161, 0
    %v517 = vsel %vm249, %v162, 0
    %v520 = vsel %vm249, %v163, 0
    %v523 = vsel %vm249, %v164, 0
    %v526 = vsel %vm249, %v165, 0
    %v529 = vsel %vm249, %v166, 0
    %v532 = vsel %vm249, %v167, 0
    %534 = vmatpush.msra.mxu0 0.0
    %535 = vmatpush.msra.mxu0 0.0
    %536 = vmatpush.msra.mxu0 0.0
    %537 = vmatpush.msra.mxu0 0.0
    %538 = vmatpush.msra.mxu0 0.0
    %539 = vmatpush.msra.mxu0 0.0
    %540 = vmatpush.msra.mxu0 0.0
    %541 = vmatpush.msra.mxu0 0.0
    %542 = vmatpush.msra.mxu0 0.0
    %543 = vmatpush.msra.mxu0 0.0
    %544 = vmatpush.msra.mxu0 0.0
    %545 = vmatpush.msra.mxu0 0.0
    %546 = vmatpush.msra.mxu0 0.0
    %547 = vmatpush.msra.mxu0 0.0
    %548 = vmatpush.msra.mxu0 %v311
    %549 = vmatpush.msra.mxu0 %v308
    %550 = vmatmul.f32.gmra.mxu0 %v487
    %v551 = vpop.f32.mrf.mxu0
    %v552 = vadd.f32 0.0, %v551
    %553 = vmatmul.f32.gmra.mxu0 %v490
    %v554 = vpop.f32.mrf.mxu0
    %v555 = vadd.f32 0.0, %v554
    %556 = vmatmul.f32.gmra.mxu0 %v493
    %v557 = vpop.f32.mrf.mxu0
    %v558 = vadd.f32 0.0, %v557
    %559 = vmatmul.f32.gmra.mxu0 %v496
    %v560 = vpop.f32.mrf.mxu0
    %v561 = vadd.f32 0.0, %v560
    %562 = vmatmul.f32.gmra.mxu0 %v499
    %v563 = vpop.f32.mrf.mxu0
    %v564 = vadd.f32 0.0, %v563
    %565 = vmatmul.f32.gmra.mxu0 %v502
    %v566 = vpop.f32.mrf.mxu0
    %v567 = vadd.f32 0.0, %v566
    %568 = vmatmul.f32.gmra.mxu0 %v505
    %v569 = vpop.f32.mrf.mxu0
    %v570 = vadd.f32 0.0, %v569
    %571 = vmatmul.f32.gmra.mxu0 %v508
    %v572 = vpop.f32.mrf.mxu0
    %v573 = vadd.f32 0.0, %v572
    %574 = vmatmul.f32.gmra.mxu0 %v511
    %v575 = vpop.f32.mrf.mxu0
    %v576 = vadd.f32 0.0, %v575
    %577 = vmatmul.f32.gmra.mxu0 %v514
    %v578 = vpop.f32.mrf.mxu0
    %v579 = vadd.f32 0.0, %v578
    %580 = vmatmul.f32.gmra.mxu0 %v517
    %v581 = vpop.f32.mrf.mxu0
    %v582 = vadd.f32 0.0, %v581
    %583 = vmatmul.f32.gmra.mxu0 %v520
    %v584 = vpop.f32.mrf.mxu0
    %v585 = vadd.f32 0.0, %v584
    %586 = vmatmul.f32.gmra.mxu0 %v523
    %v587 = vpop.f32.mrf.mxu0
    %v588 = vadd.f32 0.0, %v587
    %589 = vmatmul.f32.gmra.mxu0 %v526
    %v590 = vpop.f32.mrf.mxu0
    %v591 = vadd.f32 0.0, %v590
    %592 = vmatmul.f32.gmra.mxu0 %v529
    %v593 = vpop.f32.mrf.mxu0
    %v594 = vadd.f32 0.0, %v593
    %595 = vmatmul.f32.gmra.mxu0 %v532
    %v596 = vpop.f32.mrf.mxu0
    %v597 = vadd.f32 0.0, %v596
    %598 = vdwg.mxu0
    %v599 = vmul.f32 %v552, %v217
    %v600 = vmul.f32 %v555, %v218
    %v601 = vmul.f32 %v558, %v219
    %v602 = vmul.f32 %v561, %v220
    %v603 = vmul.f32 %v564, %v221
    %v604 = vmul.f32 %v567, %v222
    %v605 = vmul.f32 %v570, %v223
    %v606 = vmul.f32 %v573, %v224
    %v607 = vmul.f32 %v576, %v225
    %v608 = vmul.f32 %v579, %v226
    %v609 = vmul.f32 %v582, %v227
    %v610 = vmul.f32 %v585, %v228
    %v611 = vmul.f32 %v588, %v229
    %v612 = vmul.f32 %v591, %v230
    %v613 = vmul.f32 %v594, %v231
    %v614 = vmul.f32 %v597, %v232
    %615 = vmatpush.msra.mxu0 %v614
    %616 = vmatpush.msra.mxu0 %v613
    %617 = vmatpush.msra.mxu0 %v612
    %618 = vmatpush.msra.mxu0 %v611
    %619 = vmatpush.msra.mxu0 %v610
    %620 = vmatpush.msra.mxu0 %v609
    %621 = vmatpush.msra.mxu0 %v608
    %622 = vmatpush.msra.mxu0 %v607
    %623 = vmatpush.msra.mxu0 %v606
    %624 = vmatpush.msra.mxu0 %v605
    %625 = vmatpush.msra.mxu0 %v604
    %626 = vmatpush.msra.mxu0 %v603
    %627 = vmatpush.msra.mxu0 %v602
    %628 = vmatpush.msra.mxu0 %v601
    %629 = vmatpush.msra.mxu0 %v600
    %630 = vmatpush.msra.mxu0 %v599
    %631 = vmatmul.f32.gmra.mxu0 %v483
    %v632 = vpop.f32.mrf.mxu0
    %v633 = vadd.f32 0.0, %v632
    %634 = vmatmul.f32.gmra.mxu0 %v485
    %v635 = vpop.f32.mrf.mxu0
    %v636 = vadd.f32 0.0, %v635
    %637 = vdwg.mxu0
    %638 = vmatpush.msra.mxu0 %v232
    %639 = vmatpush.msra.mxu0 %v231
    %640 = vmatpush.msra.mxu0 %v230
    %641 = vmatpush.msra.mxu0 %v229
    %642 = vmatpush.msra.mxu0 %v228
    %643 = vmatpush.msra.mxu0 %v227
    %644 = vmatpush.msra.mxu0 %v226
    %645 = vmatpush.msra.mxu0 %v225
    %646 = vmatpush.msra.mxu0 %v224
    %647 = vmatpush.msra.mxu0 %v223
    %648 = vmatpush.msra.mxu0 %v222
    %649 = vmatpush.msra.mxu0 %v221
    %650 = vmatpush.msra.mxu0 %v220
    %651 = vmatpush.msra.mxu0 %v219
    %652 = vmatpush.msra.mxu0 %v218
    %653 = vmatpush.msra.mxu0 %v217
    %654 = vmatmul.f32.gmra.mxu0 %v483
    %v655 = vpop.f32.mrf.mxu0
    %v656 = vadd.f32 0.0, %v655
    %657 = vmatmul.f32.gmra.mxu0 %v485
    %v658 = vpop.f32.mrf.mxu0
    %v659 = vadd.f32 0.0, %v658
    %660 = vdwg.mxu0
    %v661 = vrcp.pop %v656
    %v662 = vmul.f32 %v656, %v661
    %v663 = vsub.f32 1.0, %v662
    %v664 = vmul.f32 %v661, %v663
    %v665 = vadd.f32 %v661, %v664
    %vm666 = vweird.f32 %v656
    %vm667 = vweird.f32 %v661
    %vm668 = vmor %vm666, %vm667
    %v669 = vsel %vm668, %v661, %v665
    %v670 = vand.u32 2147483647, %v656
    %vm671 = vcmp.eq.f32.partialorder %v670, 8.507059e+37
    %v672 = vand.u32 %v656, 2147483648
    %v673 = vor.u32 1.1754944e-38, %v672
    %v674 = vsel %vm671, %v673, %v669
    %v675 = vrcp.pop %v659
    %v676 = vmul.f32 %v659, %v675
    %v677 = vsub.f32 1.0, %v676
    %v678 = vmul.f32 %v675, %v677
    %v679 = vadd.f32 %v675, %v678
    %vm680 = vweird.f32 %v659
    %vm681 = vweird.f32 %v675
    %vm682 = vmor %vm680, %vm681
    %v683 = vsel %vm682, %v675, %v679
    %v684 = vand.u32 2147483647, %v659
    %vm685 = vcmp.eq.f32.partialorder %v684, 8.507059e+37
    %v686 = vand.u32 %v659, 2147483648
    %v687 = vor.u32 1.1754944e-38, %v686
    %v688 = vsel %vm685, %v687, %v683
    %v689 = vmul.f32 %v633, %v674
    %v690 = vmul.f32 %v636, %v688
    %v691 = vld [vmem:[%s7] sm:$0x1]
    %v693 = vperm.slane %v691, 0
    %v695 = vadd.f32 %v689, %v693
    %v696 = vadd.f32 %v690, %v693
    %v697 = vmax.f32 %v695, 0.0
    %v698 = vmax.f32 %v696, 0.0
    %v699 = vld [vmem:[%s1] sm:$0xff]
    %v700 = vld [vmem:[%s1 + $0x8] sm:$0xff]
    %701 = vset.pattern.permute.xlu0 0
    %702 = vperm.xlu0 %701, %v699
    %v703 = vpop.permute.xlu0 %702
    %704 = vset.pattern.permute.xlu0 0
    %705 = vperm.xlu0 %704, %v700
    %v706 = vpop.permute.xlu0 %705
    %vm707 = vcmp.eq.s32.totalorder %v703, %v75
    %vm708 = vcmp.eq.s32.totalorder %v706, %v75
    %v709 = vsel %vm707, 1, 0
    %v710 = vsel %vm708, 1, 0
    %v711 = vcvt.s32.f32 %v709
    %v712 = vcvt.s32.f32 %v710
    %v714 = vsel %vm249, %v711, 0
    %v717 = vsel %vm249, %v712, 0
    %719 = vmatpush.msra.mxu0 0.0
    %720 = vmatpush.msra.mxu0 0.0
    %721 = vmatpush.msra.mxu0 0.0
    %722 = vmatpush.msra.mxu0 0.0
    %723 = vmatpush.msra.mxu0 0.0
    %724 = vmatpush.msra.mxu0 0.0
    %725 = vmatpush.msra.mxu0 0.0
    %726 = vmatpush.msra.mxu0 0.0
    %727 = vmatpush.msra.mxu0 0.0
    %728 = vmatpush.msra.mxu0 0.0
    %729 = vmatpush.msra.mxu0 0.0
    %730 = vmatpush.msra.mxu0 0.0
    %731 = vmatpush.msra.mxu0 0.0
    %732 = vmatpush.msra.mxu0 0.0
    %733 = vmatpush.msra.mxu0 %v698
    %734 = vmatpush.msra.mxu0 %v697
    %735 = vmatmul.f32.gmra.mxu0 %v714
    %v736 = vpop.f32.mrf.mxu0
    %v737 = vadd.f32 0.0, %v736
    %738 = vmatmul.f32.gmra.mxu0 %v717
    %v739 = vpop.f32.mrf.mxu0
    %v740 = vadd.f32 0.0, %v739
    %741 = vdwg.mxu0
    %v742 = vld [vmem:[%s8] sm:$0xff]
    %v743 = vld [vmem:[%s8 + $0x8] sm:$0xff]
    %v744 = vld [vmem:[%s8 + $0x10] sm:$0xff]
    %v745 = vld [vmem:[%s8 + $0x18] sm:$0xff]
    %v746 = vld [vmem:[%s8 + $0x20] sm:$0xff]
    %v747 = vld [vmem:[%s8 + $0x28] sm:$0xff]
    %v748 = vld [vmem:[%s8 + $0x30] sm:$0xff]
    %v749 = vld [vmem:[%s8 + $0x38] sm:$0xff]
    %v750 = vld [vmem:[#allocation3] sm:$0xff]
    %v751 = vld [vmem:[#allocation3 + $0x8] sm:$0xff]
    %v752 = vld [vmem:[#allocation3 + $0x10] sm:$0xff]
    %v753 = vld [vmem:[#allocation3 + $0x18] sm:$0xff]
    %v754 = vld [vmem:[#allocation3 + $0x20] sm:$0xff]
    %v755 = vld [vmem:[#allocation3 + $0x28] sm:$0xff]
    %v756 = vld [vmem:[#allocation3 + $0x30] sm:$0xff]
    %v757 = vld [vmem:[#allocation3 + $0x38] sm:$0xff]
    %vm758 = vcmask 523264
    %v760 = vsel %vm758, %v740, 0
    %762 = vmatpush.msra.mxu0 0.0
    %763 = vmatpush.msra.mxu0 0.0
    %764 = vmatpush.msra.mxu0 0.0
    %765 = vmatpush.msra.mxu0 0.0
    %766 = vmatpush.msra.mxu0 0.0
    %767 = vmatpush.msra.mxu0 0.0
    %768 = vmatpush.msra.mxu0 0.0
    %769 = vmatpush.msra.mxu0 0.0
    %770 = vmatpush.msra.mxu0 %v757
    %771 = vmatpush.msra.mxu0 %v756
    %772 = vmatpush.msra.mxu0 %v755
    %773 = vmatpush.msra.mxu0 %v754
    %774 = vmatpush.msra.mxu0 %v753
    %775 = vmatpush.msra.mxu0 %v752
    %776 = vmatpush.msra.mxu0 %v751
    %777 = vmatpush.msra.mxu0 %v750
    %778 = vmatmul.f32.gmra.mxu0 %v760
    %v779 = vpop.f32.mrf.mxu0
    %v780 = vadd.f32 0.0, %v779
    %781 = vdwg.mxu0
    %v783 = vsel %vm758, %v737, 0
    %785 = vmatpush.msra.mxu0 0.0
    %786 = vmatpush.msra.mxu0 0.0
    %787 = vmatpush.msra.mxu0 0.0
    %788 = vmatpush.msra.mxu0 0.0
    %789 = vmatpush.msra.mxu0 0.0
    %790 = vmatpush.msra.mxu0 0.0
    %791 = vmatpush.msra.mxu0 0.0
    %792 = vmatpush.msra.mxu0 0.0
    %793 = vmatpush.msra.mxu0 %v749
    %794 = vmatpush.msra.mxu0 %v748
    %795 = vmatpush.msra.mxu0 %v747
    %796 = vmatpush.msra.mxu0 %v746
    %797 = vmatpush.msra.mxu0 %v745
    %798 = vmatpush.msra.mxu0 %v744
    %799 = vmatpush.msra.mxu0 %v743
    %800 = vmatpush.msra.mxu0 %v742
    %801 = vmatmul.f32.gmra.mxu0 %v783
    %v802 = vpop.f32.mrf.mxu0
    %v803 = vadd.f32 %v780, %v802
    %804 = vdwg.mxu0
    %v805 = vld [vmem:[%s10] sm:$0x1]
    %v807 = vperm.slane %v805, 0
    %v809 = vadd.f32 %v803, %v807
    %v810 = vmax.f32 %v809, 0.0
    %v811 = vld [vmem:[%s11] sm:$0xff]
    %v812 = vld [vmem:[%s11 + $0x8] sm:$0xff]
    %v813 = vld [vmem:[%s11 + $0x10] sm:$0xff]
    %v814 = vld [vmem:[%s11 + $0x18] sm:$0xff]
    %v815 = vld [vmem:[%s11 + $0x20] sm:$0xff]
    %v816 = vld [vmem:[%s11 + $0x28] sm:$0xff]
    %v817 = vld [vmem:[%s11 + $0x30] sm:$0xff]
    %v818 = vld [vmem:[%s11 + $0x38] sm:$0xff]
    %v819 = vld [vmem:[%s12] sm:$0x1]
    %v821 = vperm.slane %v819, 0
    %v824 = vsel %vm758, %v810, 0
    %826 = vmatpush.msra.mxu0 0.0
    %827 = vmatpush.msra.mxu0 0.0
    %828 = vmatpush.msra.mxu0 0.0
    %829 = vmatpush.msra.mxu0 0.0
    %830 = vmatpush.msra.mxu0 0.0
    %831 = vmatpush.msra.mxu0 0.0
    %832 = vmatpush.msra.mxu0 0.0
    %833 = vmatpush.msra.mxu0 0.0
    %834 = vmatpush.msra.mxu0 %v818
    %835 = vmatpush.msra.mxu0 %v817
    %836 = vmatpush.msra.mxu0 %v816
    %837 = vmatpush.msra.mxu0 %v815
    %838 = vmatpush.msra.mxu0 %v814
    %839 = vmatpush.msra.mxu0 %v813
    %840 = vmatpush.msra.mxu0 %v812
    %841 = vmatpush.msra.mxu0 %v811
    %842 = vmatmul.f32.gmra.mxu0 %v824
    %v843 = vpop.f32.mrf.mxu0
    %v844 = vadd.f32 %v821, %v843
    %845 = vdwg.mxu0
    %v846 = vmax.f32 %v844, 0.0
    %v847 = vld [vmem:[%s13] sm:$0xff]
    %v848 = vld [vmem:[%s13 + $0x8] sm:$0xff]
    %v849 = vld [vmem:[%s13 + $0x10] sm:$0xff]
    %v850 = vld [vmem:[%s13 + $0x18] sm:$0xff]
    %v851 = vld [vmem:[%s14] sm:$0x1]
    %v853 = vperm.slane %v851, 0
    %v856 = vsel %vm283, %v846, 0
    %858 = vmatpush.msra.mxu0 0.0
    %859 = vmatpush.msra.mxu0 0.0
    %860 = vmatpush.msra.mxu0 0.0
    %861 = vmatpush.msra.mxu0 0.0
    %862 = vmatpush.msra.mxu0 0.0
    %863 = vmatpush.msra.mxu0 0.0
    %864 = vmatpush.msra.mxu0 0.0
    %865 = vmatpush.msra.mxu0 0.0
    %866 = vmatpush.msra.mxu0 0.0
    %867 = vmatpush.msra.mxu0 0.0
    %868 = vmatpush.msra.mxu0 0.0
    %869 = vmatpush.msra.mxu0 0.0
    %870 = vmatpush.msra.mxu0 %v850
    %871 = vmatpush.msra.mxu0 %v849
    %872 = vmatpush.msra.mxu0 %v848
    %873 = vmatpush.msra.mxu0 %v847
    %874 = vmatmul.f32.gmra.mxu0 %v856
    %v875 = vpop.f32.mrf.mxu0
    %v876 = vadd.f32 %v853, %v875
    %877 = vdwg.mxu0
    %v878 = vmax.f32 %v876, 0.0
    %v879 = vld [vmem:[%s15] sm:$0xff]
    %v880 = vld [vmem:[%s15 + $0x8] sm:$0xff]
    %v881 = vld [vmem:[#allocation2] sm:$0x1]
    %v883 = vperm.slane %v881, 0
    %v886 = vsel %vm249, %v878, 0
    %888 = vmatpush.msra.mxu0 0.0
    %889 = vmatpush.msra.mxu0 0.0
    %890 = vmatpush.msra.mxu0 0.0
    %891 = vmatpush.msra.mxu0 0.0
    %892 = vmatpush.msra.mxu0 0.0
    %893 = vmatpush.msra.mxu0 0.0
    %894 = vmatpush.msra.mxu0 0.0
    %895 = vmatpush.msra.mxu0 0.0
    %896 = vmatpush.msra.mxu0 0.0
    %897 = vmatpush.msra.mxu0 0.0
    %898 = vmatpush.msra.mxu0 0.0
    %899 = vmatpush.msra.mxu0 0.0
    %900 = vmatpush.msra.mxu0 0.0
    %901 = vmatpush.msra.mxu0 0.0
    %902 = vmatpush.msra.mxu0 %v880
    %903 = vmatpush.msra.mxu0 %v879
    %904 = vmatmul.f32.gmra.mxu0 %v886
    %v905 = vpop.f32.mrf.mxu0
    %v906 = vadd.f32 %v883, %v905
    %907 = vdwg.mxu0
    %vm908 = vcmask 7168
    %909 = vst.msk [vmem:[%s17] sm:$0xff] %vm908, %v906
    // Predicated region
    $region74: #{tpu_custom_call.1} parent=1 // pred_check
      _
    $region75: #{tpu_custom_call.1} parent=1 // pred_check_branch
      %911 = sbr.rel (0) target = $region77
    $region76: #{tpu_custom_call.1} parent=1 // pred_region
      _
    $region77: #{tpu_custom_call.1} parent=1 // pred_fallthru
      _
    // Predicated region
    $region78: #{tpu_custom_call.1} parent=1 // pred_check
      _
    $region79: #{tpu_custom_call.1} parent=1 // pred_check_branch
      %913 = sbr.rel (0) target = $region81
    $region80: #{tpu_custom_call.1} parent=1 // pred_region
      _
    $region81: #{tpu_custom_call.1} parent=1 // pred_fallthru
      _
    %914 = vsyncpa [#allocation4], 1

</llo_original>
